<compile_context>
chip_gen: v7x
topology: tpu7x:2x2x1
jax: 0.10.0
libtpu: 0.0.40
codegen_flags: <defaults>
</compile_context>

<pallas_src>
import jax
import jax.numpy as jnp
from jax import lax
from jax.experimental import pallas as pl
from jax.experimental.pallas import tpu as pltpu


# ----------------------------------------------------------------------------
# Helpers
# ----------------------------------------------------------------------------
def _round_up(v, m):
    return (v + m - 1) // m * m


def _pad2(a, rows, cols):
    return jnp.pad(a, ((0, rows - a.shape[0]), (0, cols - a.shape[1])))


def _vmem_limit_bytes():
    """Per-generation VMEM budget with headroom (v5e/v6e ~108 MiB, v7x ~54 MiB)."""
    cap = 64 * 1024 * 1024
    try:
        info = pltpu.get_tpu_info()
        cap = int(getattr(info, "vmem_capacity_bytes", cap) or cap)
    except Exception:
        pass  # conservative 64 MiB default if the query is unavailable
    return int(cap * 0.85)


# ----------------------------------------------------------------------------
# Fast path: fused kernel, adj streamed into a persistent VMEM scratch
# ----------------------------------------------------------------------------
def _make_resident_kernel(tile):
    def kernel(s1_ref, adj_hbm, b1_ref, w2_ref, b2_ref, o_ref,
               adj_vmem, s2_ref, dma_sem):
        """Grid axis 0 = row tiles of the final output.

        s1_ref   [Np, Hp] bf16  resident (x @ W1, computed in XLA)
        adj_hbm  [Np, Np] bf16  raw HBM ref (memory_space=pl.ANY)
        b1_ref   [1,  Hp] f32
        w2_ref   [Hp, Cp] bf16  resident
        b2_ref   [1,  Cp] f32
        o_ref    [T,  Cp] f32   row tile i of the output
        adj_vmem [Np, Np] bf16  scratch: adj, streamed in at grid step 0
        s2_ref   [Np, Cp] bf16  scratch: relu(adj @ s1 + b1) @ W2
        dma_sem  (2,)           DMA semaphores (2-deep copy chain)
        """
        i = pl.program_id(0)
        n_pad = adj_vmem.shape[0]
        n_chunks = n_pad // tile  # static

        def adj_copy(c, slot):
            row0 = c * tile
            return pltpu.make_async_copy(
                adj_hbm.at[pl.ds(row0, tile), :],
                adj_vmem.at[pl.ds(row0, tile), :],
                dma_sem.at[slot])

        # ---- Layer 1 (+ projection by W2): once, at row tile 0.  adj is
        # streamed HBM->VMEM in row slabs; slab s+1 is in flight while the
        # layer-1 compute runs on slab s, so DMA and MXU work overlap. ----
        @pl.when(i == 0)
        def _():
            adj_copy(0, 0).start()

            def body(s, carry):
                adj_copy(s, s & 1).wait()

                @pl.when(s + 1 < n_chunks)
                def _():
                    adj_copy(s + 1, (s + 1) & 1).start()

                row0 = pl.multiple_of(s * tile, tile)
                a_slab = adj_vmem[pl.ds(row0, tile), :]            # [T, Np] bf16
                h = jnp.dot(a_slab, s1_ref[...],
                            preferred_element_type=jnp.float32)    # [T, Hp] f32
                h = jnp.maximum(h + b1_ref[...], 0.0)              # bias + ReLU
                s2 = jnp.dot(h.astype(jnp.bfloat16), w2_ref[...],
                             preferred_element_type=jnp.float32)   # [T, Cp] f32
                s2_ref[pl.ds(row0, tile), :] = s2.astype(s2_ref.dtype)
                return carry

            lax.fori_loop(0, n_chunks, body, 0)

        # ---- Layer 2, row tile i: out = adj[rows_i, :] @ s2 + b2 ----
        row0 = pl.multiple_of(i * tile, tile)
        adj_rows = adj_vmem[pl.ds(row0, tile), :]                  # [T, Np] bf16
        out = jnp.dot(adj_rows, s2_ref[...],
                      preferred_element_type=jnp.float32)          # [T, Cp] f32
        o_ref[...] = (out + b2_ref[...]).astype(o_ref.dtype)

    return kernel


def _resident_forward(s1_p, adj_p, b1_p, w2_p, b2_p, tile, vmem_limit):
    n_pad, h_pad = s1_p.shape
    c_pad = w2_p.shape[1]
    grid = (n_pad // tile,)

    flops = 2 * n_pad * n_pad * (h_pad + c_pad) + 2 * n_pad * h_pad * c_pad
    bytes_accessed = (n_pad * n_pad * 2 + n_pad * h_pad * 2
                      + h_pad * c_pad * 2 + n_pad * c_pad * 4)

    return pl.pallas_call(
        _make_resident_kernel(tile),
        out_shape=jax.ShapeDtypeStruct((n_pad, c_pad), jnp.float32),
        grid=grid,
        in_specs=[
            pl.BlockSpec((n_pad, h_pad), lambda i: (0, 0)),   # s1 (resident)
            pl.BlockSpec(memory_space=pl.ANY),                # adj stays in HBM
            pl.BlockSpec((1, h_pad), lambda i: (0, 0)),       # b1
            pl.BlockSpec((h_pad, c_pad), lambda i: (0, 0)),   # W2 (resident)
            pl.BlockSpec((1, c_pad), lambda i: (0, 0)),       # b2
        ],
        out_specs=pl.BlockSpec((tile, c_pad), lambda i: (i, 0)),
        scratch_shapes=[
            pltpu.VMEM((n_pad, n_pad), jnp.bfloat16),   # adj (single HBM read)
            pltpu.VMEM((n_pad, c_pad), jnp.bfloat16),   # s2
            pltpu.SemaphoreType.DMA((2,)),
        ],
        compiler_params=pltpu.CompilerParams(
            dimension_semantics=("arbitrary",),   # step 0 fills the scratches
            vmem_limit_bytes=vmem_limit,
        ),
        cost_estimate=pl.CostEstimate(flops=flops, transcendentals=0,
                                      bytes_accessed=bytes_accessed),
    )(s1_p, adj_p, b1_p, w2_p, b2_p)


# ----------------------------------------------------------------------------
# Scalable path: two row x K tiled calls (adj auto-pipelined per tile)
# ----------------------------------------------------------------------------
def _layer1_streamed_kernel(adj_ref, s1_ref, b1_ref, w2_ref, s2_ref, acc_ref):
    k = pl.program_id(1)

    @pl.when(k == 0)
    def _():
        acc_ref[...] = jnp.zeros_like(acc_ref)

    acc_ref[...] += jnp.dot(adj_ref[...], s1_ref[...],
                            preferred_element_type=jnp.float32)

    @pl.when(k == pl.num_programs(1) - 1)
    def _():
        h = jnp.maximum(acc_ref[...] + b1_ref[...], 0.0)
        s2_ref[...] = jnp.dot(h.astype(jnp.bfloat16), w2_ref[...],
                              preferred_element_type=jnp.float32
                              ).astype(s2_ref.dtype)


def _layer2_streamed_kernel(adj_ref, s2_ref, b2_ref, o_ref, acc_ref):
    k = pl.program_id(1)

    @pl.when(k == 0)
    def _():
        acc_ref[...] = jnp.zeros_like(acc_ref)

    acc_ref[...] += jnp.dot(adj_ref[...], s2_ref[...],
                            preferred_element_type=jnp.float32)

    @pl.when(k == pl.num_programs(1) - 1)
    def _():
        o_ref[...] = (acc_ref[...] + b2_ref[...]).astype(o_ref.dtype)


def _streamed_forward(s1_p, adj_p, b1_p, w2_p, b2_p, tile, vmem_limit):
    n_pad, h_pad = s1_p.shape
    c_pad = w2_p.shape[1]
    grid = (n_pad // tile, n_pad // tile)
    semantics = ("parallel", "arbitrary")   # row tiles shard across v7x cores

    s2 = pl.pallas_call(
        _layer1_streamed_kernel,
        out_shape=jax.ShapeDtypeStruct((n_pad, c_pad), jnp.bfloat16),
        grid=grid,
        in_specs=[
            pl.BlockSpec((tile, tile), lambda i, k: (i, k)),    # adj tile
            pl.BlockSpec((tile, h_pad), lambda i, k: (k, 0)),   # s1 K tile
            pl.BlockSpec((1, h_pad), lambda i, k: (0, 0)),      # b1
            pl.BlockSpec((h_pad, c_pad), lambda i, k: (0, 0)),  # W2
        ],
        out_specs=pl.BlockSpec((tile, c_pad), lambda i, k: (i, 0)),
        scratch_shapes=[pltpu.VMEM((tile, h_pad), jnp.float32)],
        compiler_params=pltpu.CompilerParams(
            dimension_semantics=semantics, vmem_limit_bytes=vmem_limit),
        cost_estimate=pl.CostEstimate(
            flops=2 * n_pad * n_pad * h_pad + 2 * n_pad * h_pad * c_pad,
            transcendentals=0,
            bytes_accessed=(n_pad * n_pad * 2 + n_pad * h_pad * 2
                            + n_pad * c_pad * 2)),
    )(adj_p, s1_p, b1_p, w2_p)

    out = pl.pallas_call(
        _layer2_streamed_kernel,
        out_shape=jax.ShapeDtypeStruct((n_pad, c_pad), jnp.float32),
        grid=grid,
        in_specs=[
            pl.BlockSpec((tile, tile), lambda i, k: (i, k)),    # adj tile
            pl.BlockSpec((tile, c_pad), lambda i, k: (k, 0)),   # s2 K tile
            pl.BlockSpec((1, c_pad), lambda i, k: (0, 0)),      # b2
        ],
        out_specs=pl.BlockSpec((tile, c_pad), lambda i, k: (i, 0)),
        scratch_shapes=[pltpu.VMEM((tile, c_pad), jnp.float32)],
        compiler_params=pltpu.CompilerParams(
            dimension_semantics=semantics, vmem_limit_bytes=vmem_limit),
        cost_estimate=pl.CostEstimate(
            flops=2 * n_pad * n_pad * c_pad,
            transcendentals=0,
            bytes_accessed=(n_pad * n_pad * 2 + n_pad * c_pad * 2
                            + n_pad * c_pad * 4)),
    )(adj_p, s2, b2_p)

    return out


# ----------------------------------------------------------------------------
# Public wrapper
# ----------------------------------------------------------------------------
def gcn_forward(x, adj, w1, b1, w2, b2, *, tm=256, force_streamed=False):
    """GCN forward: relu(adj @ (x @ W1) + b1) -> adj @ (h @ W2) + b2."""
    n, _ = x.shape
    nhid = w1.shape[1]
    nclass = w2.shape[1]

    n_pad = _round_up(n, 128)
    h_pad = _round_up(nhid, 128)
    c_pad = _round_up(nclass, 128)

    # Row / K tile: largest of {128, 256, 512} that divides n_pad and is <= tm.
    tile = 128
    for t in (256, 512):
        if t <= tm and n_pad % t == 0:
            tile = t

    vmem_limit = _vmem_limit_bytes()

    # Layer-1 projection s1 = x @ W1 in plain XLA (negligible work), f32 then
    # cast to bf16 for the MXU.  Biases stay f32 for the epilogue.
    s1 = jnp.dot(x.astype(jnp.float32), w1.astype(jnp.float32))
    s1_p = _pad2(s1, n_pad, h_pad).astype(jnp.bfloat16)
    adj_p = _pad2(adj, n_pad, n_pad).astype(jnp.bfloat16)
    w2_p = _pad2(w2, h_pad, c_pad).astype(jnp.bfloat16)
    b1_p = jnp.pad(b1, (0, h_pad - nhid)).reshape(1, h_pad).astype(jnp.float32)
    b2_p = jnp.pad(b2, (0, c_pad - nclass)).reshape(1, c_pad).astype(jnp.float32)

    # Estimated peak VMEM of the resident fast path (incl. default double
    # buffering of the pipelined blocks and the per-slab f32 temporaries).
    resident_bytes = (
        n_pad * n_pad * 2            # adj VMEM scratch (bf16)
        + n_pad * c_pad * 2          # s2 scratch (bf16)
        + 2 * n_pad * h_pad * 2      # s1 resident block (double-buffered)
        + 2 * h_pad * c_pad * 2      # W2 resident block (double-buffered)
        + 2 * tile * c_pad * 4       # output tile (double-buffered)
        + tile * h_pad * 4           # layer-1 f32 slab temporary
        + 2 * tile * c_pad * 4       # layer-1 / layer-2 f32 temporaries
        + 4 * (h_pad + c_pad) * 4    # biases + slack
    )
    use_resident = (not force_streamed) and resident_bytes <= int(0.9 * vmem_limit)

    if use_resident:
        out_padded = _resident_forward(s1_p, adj_p, b1_p, w2_p, b2_p,
                                       tile, vmem_limit)
    else:
        out_padded = _streamed_forward(s1_p, adj_p, b1_p, w2_p, b2_p,
                                       tile, vmem_limit)
    return out_padded[:n, :nclass]


# ----------------------------------------------------------------------------
# Self-test
# ----------------------------------------------------------------------------
def _make_inputs(key, n, nfeat, nhid, nclass):
    kx, kadj, kw1, kb1, kw2, kb2 = jax.random.split(key, 6)
    x = jax.random.normal(kx, (n, nfeat), jnp.float32)
    # Symmetric, row-normalized adjacency with self loops.
    a = jax.random.uniform(kadj, (n, n), jnp.float32)
    a = (a + a.T) * 0.5 + jnp.eye(n, dtype=jnp.float32)
    adj = a / jnp.sum(a, axis=1, keepdims=True)
    # GraphConvolution.reset_parameters: uniform(-stdv, stdv), stdv=1/sqrt(out).
    stdv1 = 1.0 / float(nhid) ** 0.5
    w1 = jax.random.uniform(kw1, (nfeat, nhid), jnp.float32, -stdv1, stdv1)
    b1 = jax.random.uniform(kb1, (nhid,), jnp.float32, -stdv1, stdv1)
    stdv2 = 1.0 / float(nclass) ** 0.5
    w2 = jax.random.uniform(kw2, (nhid, nclass), jnp.float32, -stdv2, stdv2)
    b2 = jax.random.uniform(kb2, (nclass,), jnp.float32, -stdv2, stdv2)
    return x, adj, w1, b1, w2, b2


def _reference(x, adj, w1, b1, w2, b2):
    h = jnp.maximum(adj @ (x @ w1) + b1, 0.0)
    return adj @ (h @ w2) + b2


if __name__ == "__main__":
    key = jax.random.PRNGKey(0)

    # Small shapes consistent with the module: (N, nfeat, nhid, nclass).
    # The second config is multi-tile so the chunked adj DMA loop and the
    # K-accumulation of the streamed path are actually exercised.
    configs = [(16, 32, 32, 8), (300, 32, 32, 8)]

    for n, nfeat, nhid, nclass in configs:
        key, sub = jax.random.split(key)
        x, adj, w1, b1, w2, b2 = _make_inputs(sub, n, nfeat, nhid, nclass)
        ref = _reference(x, adj, w1, b1, w2, b2)

        for force_streamed in (False, True):
            out = gcn_forward(x, adj, w1, b1, w2, b2,
                              force_streamed=force_streamed)
            out = jax.block_until_ready(out)
            assert out.shape == (n, nclass), out.shape
            assert bool(jnp.all(jnp.isfinite(out)))
            max_err = float(jnp.max(jnp.abs(out - ref)))
            # bf16 MXU operands + bf16 s2 scratch -> loose tolerance vs f32 ref.
            assert max_err < 1e-1, (
                f"n={n} streamed={force_streamed}: max abs err {max_err}")

    print("KERNEL_OK")
</pallas_src>

<mosaic_0001>
module attributes {stable_mosaic.version = 11 : i64} {
  func.func @kernel(%arg0: i32, %arg1: memref<128x128xbf16, #tpu.memory_space<vmem>>, %arg2: memref<128x128xbf16, #tpu.memory_space<any>>, %arg3: memref<1x128xf32, #tpu.memory_space<vmem>>, %arg4: memref<128x128xbf16, #tpu.memory_space<vmem>>, %arg5: memref<1x128xf32, #tpu.memory_space<vmem>>, %arg6: memref<128x128xf32, #tpu.memory_space<vmem>>, %arg7: memref<128x128xbf16, #tpu.memory_space<vmem>>, %arg8: memref<128x128xbf16, #tpu.memory_space<vmem>>, %arg9: memref<2x!tpu.dma_semaphore, #tpu.memory_space<semaphore_mem>>) attributes {dimension_semantics = [#tpu.dimension_semantics<arbitrary>], iteration_bounds = array<i64: 1>, scalar_prefetch = 0 : i64, scratch_operands = 3 : i64, tpu.core_type = #tpu.core_type<tc>, window_params = [{pipeline_mode = #tpu.pipeline_mode<synchronous>, transform_indices = @transform_0, window_bounds = array<i64: 128, 128>}, {}, {pipeline_mode = #tpu.pipeline_mode<synchronous>, transform_indices = @transform_2, window_bounds = array<i64: 1, 128>}, {pipeline_mode = #tpu.pipeline_mode<synchronous>, transform_indices = @transform_3, window_bounds = array<i64: 128, 128>}, {pipeline_mode = #tpu.pipeline_mode<synchronous>, transform_indices = @transform_4, window_bounds = array<i64: 1, 128>}, {transform_indices = @transform_5, window_bounds = array<i64: 128, 128>}]} {
    %c0_i32 = arith.constant 0 : i32
    %0 = arith.cmpi eq, %arg0, %c0_i32 : i32
    %1 = arith.extui %0 : i1 to i32
    %c0_i32_0 = arith.constant 0 : i32
    %2 = arith.cmpi ne, %1, %c0_i32_0 : i32
    scf.if %2 {
      %c0_i32_7 = arith.constant 0 : i32
      %c0_i32_8 = arith.constant 0 : i32
      %c0_i32_9 = arith.constant 0 : i32
      %13 = tpu.memref_slice %arg2[%c0_i32_8, %c0_i32_9] : memref<128x128xbf16, #tpu.memory_space<any>> -> memref<128x128xbf16, #tpu.memory_space<any>>
      %c0_i32_10 = arith.constant 0 : i32
      %c0_i32_11 = arith.constant 0 : i32
      %14 = tpu.memref_slice %arg7[%c0_i32_10, %c0_i32_11] : memref<128x128xbf16, #tpu.memory_space<vmem>> -> memref<128x128xbf16, #tpu.memory_space<vmem>>
      %15 = tpu.memref_slice %arg9[%c0_i32_7] : memref<2x!tpu.dma_semaphore, #tpu.memory_space<semaphore_mem>> -> memref<1x!tpu.dma_semaphore, #tpu.memory_space<semaphore_mem>>
      %16 = tpu.memref_squeeze %15 : memref<1x!tpu.dma_semaphore, #tpu.memory_space<semaphore_mem>> -> memref<!tpu.dma_semaphore, #tpu.memory_space<semaphore_mem>>
      tpu.enqueue_dma source(%13 : memref<128x128xbf16, #tpu.memory_space<any>>) target(%14 : memref<128x128xbf16, #tpu.memory_space<vmem>>) target_semaphore(%16 : memref<!tpu.dma_semaphore, #tpu.memory_space<semaphore_mem>>)
      %c0_i32_12 = arith.constant 0 : i32
      %c1_i32 = arith.constant 1 : i32
      %17 = arith.andi %c0_i32_12, %c1_i32 : i32
      %c128_i32_13 = arith.constant 128 : i32
      %18 = arith.muli %c0_i32_12, %c128_i32_13 : i32
      %c0_i32_14 = arith.constant 0 : i32
      %19 = tpu.memref_slice %arg2[%18, %c0_i32_14] : memref<128x128xbf16, #tpu.memory_space<any>> -> memref<128x128xbf16, #tpu.memory_space<any>>
      %c0_i32_15 = arith.constant 0 : i32
      %20 = tpu.memref_slice %arg7[%18, %c0_i32_15] : memref<128x128xbf16, #tpu.memory_space<vmem>> -> memref<128x128xbf16, #tpu.memory_space<vmem>>
      %21 = tpu.memref_slice %arg9[%17] : memref<2x!tpu.dma_semaphore, #tpu.memory_space<semaphore_mem>> -> memref<1x!tpu.dma_semaphore, #tpu.memory_space<semaphore_mem>>
      %22 = tpu.memref_squeeze %21 : memref<1x!tpu.dma_semaphore, #tpu.memory_space<semaphore_mem>> -> memref<!tpu.dma_semaphore, #tpu.memory_space<semaphore_mem>>
      tpu.wait_dma2 semaphore(%22 : memref<!tpu.dma_semaphore, #tpu.memory_space<semaphore_mem>>) src(%19 : memref<128x128xbf16, #tpu.memory_space<any>>) dst(%20 : memref<128x128xbf16, #tpu.memory_space<vmem>>)
      %c1_i32_16 = arith.constant 1 : i32
      %23 = arith.addi %c0_i32_12, %c1_i32_16 : i32
      %c1_i32_17 = arith.constant 1 : i32
      %24 = arith.cmpi slt, %23, %c1_i32_17 : i32
      %25 = arith.extui %24 : i1 to i32
      %c0_i32_18 = arith.constant 0 : i32
      %26 = arith.cmpi ne, %25, %c0_i32_18 : i32
      scf.if %26 {
        %c1_i32_32 = arith.constant 1 : i32
        %44 = arith.addi %c0_i32_12, %c1_i32_32 : i32
        %c1_i32_33 = arith.constant 1 : i32
        %45 = arith.addi %c0_i32_12, %c1_i32_33 : i32
        %c1_i32_34 = arith.constant 1 : i32
        %46 = arith.andi %45, %c1_i32_34 : i32
        %c128_i32_35 = arith.constant 128 : i32
        %47 = arith.muli %44, %c128_i32_35 : i32
        %c0_i32_36 = arith.constant 0 : i32
        %48 = tpu.memref_slice %arg2[%47, %c0_i32_36] : memref<128x128xbf16, #tpu.memory_space<any>> -> memref<128x128xbf16, #tpu.memory_space<any>>
        %c0_i32_37 = arith.constant 0 : i32
        %49 = tpu.memref_slice %arg7[%47, %c0_i32_37] : memref<128x128xbf16, #tpu.memory_space<vmem>> -> memref<128x128xbf16, #tpu.memory_space<vmem>>
        %50 = tpu.memref_slice %arg9[%46] : memref<2x!tpu.dma_semaphore, #tpu.memory_space<semaphore_mem>> -> memref<1x!tpu.dma_semaphore, #tpu.memory_space<semaphore_mem>>
        %51 = tpu.memref_squeeze %50 : memref<1x!tpu.dma_semaphore, #tpu.memory_space<semaphore_mem>> -> memref<!tpu.dma_semaphore, #tpu.memory_space<semaphore_mem>>
        tpu.enqueue_dma source(%48 : memref<128x128xbf16, #tpu.memory_space<any>>) target(%49 : memref<128x128xbf16, #tpu.memory_space<vmem>>) target_semaphore(%51 : memref<!tpu.dma_semaphore, #tpu.memory_space<semaphore_mem>>)
      } else {
      }
      %c128_i32_19 = arith.constant 128 : i32
      %27 = arith.muli %c0_i32_12, %c128_i32_19 : i32
      %28 = tpu.assume_multiple %27, 128 : i32
      %29 = arith.index_cast %28 : i32 to index
      %c0_20 = arith.constant 0 : index
      %30 = vector.load %arg7[%29, %c0_20] : memref<128x128xbf16, #tpu.memory_space<vmem>>, vector<128x128xbf16>
      %c0_21 = arith.constant 0 : index
      %c0_22 = arith.constant 0 : index
      %31 = vector.load %arg1[%c0_21, %c0_22] : memref<128x128xbf16, #tpu.memory_space<vmem>>, vector<128x128xbf16>
      %cst_23 = arith.constant dense<0.000000e+00> : vector<128x128xf32>
      %32 = tpu.matmul %30, %31, %cst_23 {dimension_numbers = #tpu.dot_dimension_numbers<[1], [0], [0], [1], [0, 0, 1, 1], [], []>} : vector<128x128xbf16>, vector<128x128xbf16>, vector<128x128xf32> -> vector<128x128xf32>
      %c0_24 = arith.constant 0 : index
      %c0_25 = arith.constant 0 : index
      %33 = vector.load %arg3[%c0_24, %c0_25] : memref<1x128xf32, #tpu.memory_space<vmem>>, vector<1x128xf32>
      %34 = vector.broadcast %33 : vector<1x128xf32> to vector<128x128xf32>
      %35 = arith.addf %32, %34 : vector<128x128xf32>
      %cst_26 = arith.constant 0.000000e+00 : f32
      %36 = vector.broadcast %cst_26 : f32 to vector<128x128xf32>
      %37 = arith.maximumf %35, %36 : vector<128x128xf32>
      %38 = arith.truncf %37 : vector<128x128xf32> to vector<128x128xbf16>
      %c0_27 = arith.constant 0 : index
      %c0_28 = arith.constant 0 : index
      %39 = vector.load %arg4[%c0_27, %c0_28] : memref<128x128xbf16, #tpu.memory_space<vmem>>, vector<128x128xbf16>
      %cst_29 = arith.constant dense<0.000000e+00> : vector<128x128xf32>
      %40 = tpu.matmul %38, %39, %cst_29 {dimension_numbers = #tpu.dot_dimension_numbers<[1], [0], [0], [1], [0, 0, 1, 1], [], []>} : vector<128x128xbf16>, vector<128x128xbf16>, vector<128x128xf32> -> vector<128x128xf32>
      %41 = arith.truncf %40 : vector<128x128xf32> to vector<128x128xbf16>
      %42 = arith.index_cast %28 : i32 to index
      %c0_30 = arith.constant 0 : index
      %43 = vector.load %arg8[%42, %c0_30] : memref<128x128xbf16, #tpu.memory_space<vmem>>, vector<128x128xbf16>
      tpu.vector_store %arg8[%42, %c0_30], %41 {strides = array<i32>} : memref<128x128xbf16, #tpu.memory_space<vmem>>, vector<128x128xbf16>,
      %c1_i32_31 = arith.constant 1 : i32
    } else {
    }
    %c128_i32 = arith.constant 128 : i32
    %3 = arith.muli %arg0, %c128_i32 : i32
    %4 = tpu.assume_multiple %3, 128 : i32
    %5 = arith.index_cast %4 : i32 to index
    %c0 = arith.constant 0 : index
    %6 = vector.load %arg7[%5, %c0] : memref<128x128xbf16, #tpu.memory_space<vmem>>, vector<128x128xbf16>
    %c0_1 = arith.constant 0 : index
    %c0_2 = arith.constant 0 : index
    %7 = vector.load %arg8[%c0_1, %c0_2] : memref<128x128xbf16, #tpu.memory_space<vmem>>, vector<128x128xbf16>
    %cst = arith.constant dense<0.000000e+00> : vector<128x128xf32>
    %8 = tpu.matmul %6, %7, %cst {dimension_numbers = #tpu.dot_dimension_numbers<[1], [0], [0], [1], [0, 0, 1, 1], [], []>} : vector<128x128xbf16>, vector<128x128xbf16>, vector<128x128xf32> -> vector<128x128xf32>
    %c0_3 = arith.constant 0 : index
    %c0_4 = arith.constant 0 : index
    %9 = vector.load %arg5[%c0_3, %c0_4] : memref<1x128xf32, #tpu.memory_space<vmem>>, vector<1x128xf32>
    %10 = vector.broadcast %9 : vector<1x128xf32> to vector<128x128xf32>
    %11 = arith.addf %8, %10 : vector<128x128xf32>
    %c0_5 = arith.constant 0 : index
    %c0_6 = arith.constant 0 : index
    %12 = vector.load %arg6[%c0_5, %c0_6] : memref<128x128xf32, #tpu.memory_space<vmem>>, vector<128x128xf32>
    tpu.vector_store %arg6[%c0_5, %c0_6], %11 {strides = array<i32>} : memref<128x128xf32, #tpu.memory_space<vmem>>, vector<128x128xf32>,
    return
  }
  func.func @transform_0(%arg0: i32) -> (i32, i32) {
    %c0_i32 = arith.constant 0 : i32
    %c0_i32_0 = arith.constant 0 : i32
    %c0_i32_1 = arith.constant 0 : i32
    return %c0_i32, %c0_i32_0 : i32, i32
  }
  func.func @transform_2(%arg0: i32) -> (i32, i32) {
    %c0_i32 = arith.constant 0 : i32
    %c0_i32_0 = arith.constant 0 : i32
    %c0_i32_1 = arith.constant 0 : i32
    return %c0_i32, %c0_i32_0 : i32, i32
  }
  func.func @transform_3(%arg0: i32) -> (i32, i32) {
    %c0_i32 = arith.constant 0 : i32
    %c0_i32_0 = arith.constant 0 : i32
    %c0_i32_1 = arith.constant 0 : i32
    return %c0_i32, %c0_i32_0 : i32, i32
  }
  func.func @transform_4(%arg0: i32) -> (i32, i32) {
    %c0_i32 = arith.constant 0 : i32
    %c0_i32_0 = arith.constant 0 : i32
    %c0_i32_1 = arith.constant 0 : i32
    return %c0_i32, %c0_i32_0 : i32, i32
  }
  func.func @transform_5(%arg0: i32) -> (i32, i32) {
    %c0_i32 = arith.constant 0 : i32
    %c0_i32_0 = arith.constant 0 : i32
    return %arg0, %c0_i32 : i32, i32
  }
}

</mosaic_0001>

<llo_original>
// kernel: tpu_custom_call.1
$region0: #{tpu_custom_call.1}
  #allocation0 [shape = 'u32[]', space=smem, size = 0x4, offset = 0x4, fixed_abs, tag = 'smem constant byte address 0x4 - core index']
  #allocation1 [shape = 'u32[144,128]{1,0:T(1,128)}', space=vmem, size = 0x12000, scoped, tag = 'internal scratch']
  #allocation2 [shape = 'bf16[128,128]{1,0:T(16,128)(2,1)}', space=vmem, size = 0x8000, scoped, tag = 'scratch operand']
  #allocation3 [shape = 'bf16[128,128]{1,0:T(16,128)(2,1)}', space=vmem, size = 0x8000, scoped, tag = 'scratch operand']
  #allocation4 [shape = 's32[2]{0}', space=sflag, size = 0x8, scoped, tag = 'scratch operand']
  #allocation11 [shape = 's32[]', space=sflag, size = 0x4, offset = 0, fixed_abs, tag = 'sflag constant byte address 0x0 - dummy sync flag']
  #allocation12 [shape = 's32[]', space=sflag, size = 0x4, offset = 0, fixed_abs, tag = 'sflag constant byte address 0x0 - dummy sync flag']
  #allocation13 [shape = 'u32[]', space=smem, size = 0x4, offset = 0x44, fixed_abs, tag = 'smem constant byte address 0x44 - assertion arg 0']
  #allocation14 [shape = 'u32[]', space=smem, size = 0x4, offset = 0x48, fixed_abs, tag = 'smem constant byte address 0x48 - assertion arg 1']
  %s0 = inlined_call_operand.hbm [shape: bf16[128,128], index: 0, kind: input, shape index: {}]
  %s1 = inlined_call_operand.hbm [shape: bf16[128,128], index: 1, kind: input, shape index: {}]
  %s2 = inlined_call_operand.vmem [shape: f32[1,128], index: 2, kind: input, shape index: {}]
  %s3 = inlined_call_operand.hbm [shape: bf16[128,128], index: 3, kind: input, shape index: {}]
  %s4 = inlined_call_operand.vmem [shape: f32[1,128], index: 4, kind: input, shape index: {}]
  %s5 = inlined_call_operand.hbm [shape: f32[128,128], index: 5, kind: output, shape index: {}]
  %s6 = sld [smem:[#allocation0]]
  $region42: #{tpu_custom_call.1} parent=0
    _
  %s8 = ssub.s32 1, %s6
  %s9 = scalar_select 0, %s8, %s6
  $region1: #{tpu_custom_call.1} parent=0
    #allocation5 [shape = 'u8[32768]{0}', space=vmem, size = 0x8000, scoped, tag = 'input window, operand 0, single buffered']
    #allocation6 [shape = 's32[1]{0}', space=sflag, size = 0x4, scoped, tag = 'scoped memory for tpu_custom_call.1']
    #allocation7 [shape = 's32[1]{0}', space=sflag, size = 0x4, scoped, tag = 'scoped memory for tpu_custom_call.1']
    #allocation8 [shape = 'u8[32768]{0}', space=vmem, size = 0x8000, scoped, tag = 'input window, operand 3, single buffered']
    #allocation9 [shape = 's32[1]{0}', space=sflag, size = 0x4, scoped, tag = 'scoped memory for tpu_custom_call.1']
    #allocation10 [shape = 'u8[65536]{0}', space=vmem, size = 0x10000, scoped, tag = 'output window, operand 0, single buffered']
    %10 = vsyncpa [#allocation6], 0
    %11 = vsyncpa [#allocation9], 0
    %12 = vsyncpa [#allocation7], 0
    // Predicated region
    $region2: #{tpu_custom_call.1} parent=1 // pred_check
      _
    $region3: #{tpu_custom_call.1} parent=1 // pred_check_branch
      %14 = sbr.rel (0) target = $region5
    $region4: #{tpu_custom_call.1} parent=1 // pred_region
      %s16 = ssub.s32 1024, 1024
      %17 = vsyncadd [#allocation6], %s16
      %s18 = sshll.u32 [#allocation5], 4
      %s19 = int_to_ptr.vmem [resolvable:$true] %s18
      %24 = dma.hbm_to_vmem [thread:$0]  %s0, 1024, %s19, [#allocation6], 64, 64, 4
    $region5: #{tpu_custom_call.1} parent=1 // pred_fallthru
      _
    // Predicated region
    $region6: #{tpu_custom_call.1} parent=1 // pred_check
      _
    $region7: #{tpu_custom_call.1} parent=1 // pred_check_branch
      %26 = sbr.rel (0) target = $region9
    $region8: #{tpu_custom_call.1} parent=1 // pred_region
      _
    $region9: #{tpu_custom_call.1} parent=1 // pred_fallthru
      _
    // Predicated region
    $region10: #{tpu_custom_call.1} parent=1 // pred_check
      _
    $region11: #{tpu_custom_call.1} parent=1 // pred_check_branch
      %28 = sbr.rel (0) target = $region13
    $region12: #{tpu_custom_call.1} parent=1 // pred_region
      %s30 = ssub.s32 1024, 1024
      %31 = vsyncadd [#allocation9], %s30
      %s32 = sshll.u32 [#allocation8], 4
      %s33 = int_to_ptr.vmem [resolvable:$true] %s32
      %38 = dma.hbm_to_vmem [thread:$0]  %s3, 1024, %s33, [#allocation9], 64, 64, 4
    $region13: #{tpu_custom_call.1} parent=1 // pred_fallthru
      _
    // Predicated region
    $region14: #{tpu_custom_call.1} parent=1 // pred_check
      _
    $region15: #{tpu_custom_call.1} parent=1 // pred_check_branch
      %40 = sbr.rel (0) target = $region17
    $region16: #{tpu_custom_call.1} parent=1 // pred_region
      _
    $region17: #{tpu_custom_call.1} parent=1 // pred_fallthru
      _
    // Predicated region
    $region18: #{tpu_custom_call.1} parent=1 // pred_check
      _
    $region19: #{tpu_custom_call.1} parent=1 // pred_check_branch
      %42 = sbr.rel (0) target = $region21
    $region20: #{tpu_custom_call.1} parent=1 // pred_region
      %43 = dma.done [#allocation6], 1024
    $region21: #{tpu_custom_call.1} parent=1 // pred_fallthru
      _
    // Predicated region
    $region22: #{tpu_custom_call.1} parent=1 // pred_check
      _
    $region23: #{tpu_custom_call.1} parent=1 // pred_check_branch
      %45 = sbr.rel (0) target = $region25
    $region24: #{tpu_custom_call.1} parent=1 // pred_region
      %46 = dma.done [#allocation9], 1024
    $region25: #{tpu_custom_call.1} parent=1 // pred_fallthru
      _
    %p48 = scmp.eq.s32.totalorder 0, 0
    // Predicated region
    $region26: #{tpu_custom_call.1} parent=1 // pred_check
      %p49 = pneg %p48
    $region27: #{tpu_custom_call.1} parent=1 // pred_check_branch
      %51 = sbr.rel (%p49) target = $region29
    $region28: #{tpu_custom_call.1} parent=1 // pred_region
      // Predicated region
      $region30: #{tpu_custom_call.1} parent=28 // pred_check
        _
      $region31: #{tpu_custom_call.1} parent=28 // pred_check_branch
        %53 = sbr.rel target = $region33
      $region32: #{tpu_custom_call.1} parent=28 // pred_region
        %54 = sst [smem:[#allocation13]] [#allocation12]
        %55 = sst [smem:[#allocation14]] [#allocation11]
      $region33: #{tpu_custom_call.1} parent=28 // pred_fallthru
        _
      %57 = shalt.err (0)
      %s59 = sshll.u32 [#allocation2], 4
      %s60 = int_to_ptr.vmem [resolvable:$true] %s59
      %62 = dma.hbm_to_vmem [thread:$0]  %s1, 1024, %s60, [#allocation4]
      %s63 = smul.u32 4, 16
      %s64 = smul.u32 %s63, 1
      %s65 = sshll.u32 %s64, 4
      %66 = dma.done [#allocation4], %s65
      %v67 = vld [vmem:[#allocation2] sm:$0xff]
      %v68 = vld [vmem:[#allocation2 + $0x8] sm:$0xff]
      %v69 = vld [vmem:[#allocation2 + $0x10] sm:$0xff]
      %v70 = vld [vmem:[#allocation2 + $0x18] sm:$0xff]
      %v71 = vld [vmem:[#allocation2 + $0x20] sm:$0xff]
      %v72 = vld [vmem:[#allocation2 + $0x28] sm:$0xff]
      %v73 = vld [vmem:[#allocation2 + $0x30] sm:$0xff]
      %v74 = vld [vmem:[#allocation2 + $0x38] sm:$0xff]
      %v75 = vld [vmem:[#allocation5] sm:$0xf]
      %v76 = vld [vmem:[#allocation5 + $0x4] sm:$0xf]
      %v77 = vld [vmem:[#allocation5 + $0x8] sm:$0xf]
      %v78 = vld [vmem:[#allocation5 + $0xc] sm:$0xf]
      %v79 = vld [vmem:[#allocation5 + $0x10] sm:$0xf]
      %v80 = vld [vmem:[#allocation5 + $0x14] sm:$0xf]
      %v81 = vld [vmem:[#allocation5 + $0x18] sm:$0xf]
      %v82 = vld [vmem:[#allocation5 + $0x1c] sm:$0xf]
      %v83 = vld [vmem:[#allocation5 + $0x20] sm:$0xf]
      %v84 = vld [vmem:[#allocation5 + $0x24] sm:$0xf]
      %v85 = vld [vmem:[#allocation5 + $0x28] sm:$0xf]
      %v86 = vld [vmem:[#allocation5 + $0x2c] sm:$0xf]
      %v87 = vld [vmem:[#allocation5 + $0x30] sm:$0xf]
      %v88 = vld [vmem:[#allocation5 + $0x34] sm:$0xf]
      %v89 = vld [vmem:[#allocation5 + $0x38] sm:$0xf]
      %v90 = vld [vmem:[#allocation5 + $0x3c] sm:$0xf]
      %v91 = vld [vmem:[%s2] sm:$0x1]
      %v93 = vlaneseq
      %v94 = vshrl.u32 %v93, 7
      %v95 = vsub.s32 0, %v94
      %v96 = vrot.slane %v91, %v95
      %v114 = vunpack.c.l.b16 %v75
      %v115 = vunpack.c.l.b16 %v76
      %v116 = vunpack.c.l.b16 %v77
      %v117 = vunpack.c.l.b16 %v78
      %v118 = vunpack.c.l.b16 %v79
      %v119 = vunpack.c.l.b16 %v80
      %v120 = vunpack.c.l.b16 %v81
      %v121 = vunpack.c.l.b16 %v82
      %v122 = vunpack.c.l.b16 %v83
      %v123 = vunpack.c.l.b16 %v84
      %v124 = vunpack.c.l.b16 %v85
      %v125 = vunpack.c.l.b16 %v86
      %v126 = vunpack.c.l.b16 %v87
      %v127 = vunpack.c.l.b16 %v88
      %v128 = vunpack.c.l.b16 %v89
      %v129 = vunpack.c.l.b16 %v90
      %v130 = vpack.c.b16 %v115, %v114
      %v131 = vpack.c.b16 %v117, %v116
      %v132 = vpack.c.b16 %v119, %v118
      %v133 = vpack.c.b16 %v121, %v120
      %v134 = vpack.c.b16 %v123, %v122
      %v135 = vpack.c.b16 %v125, %v124
      %v136 = vpack.c.b16 %v127, %v126
      %v137 = vpack.c.b16 %v129, %v128
      %146 = vmatprep.subr.bf16.mxu0 0
      %147 = vmatpush1.bf16.msra.mxu0 %v130
      %148 = vmatprep.subr.bf16.mxu0 0
      %149 = vmatpush1.bf16.msra.mxu0 %v131
      %150 = vmatprep.subr.bf16.mxu0 0
      %151 = vmatpush1.bf16.msra.mxu0 %v132
      %152 = vmatprep.subr.bf16.mxu0 0
      %153 = vmatpush1.bf16.msra.mxu0 %v133
      %154 = vmatprep.subr.bf16.mxu0 0
      %155 = vmatpush1.bf16.msra.mxu0 %v134
      %156 = vmatprep.subr.bf16.mxu0 0
      %157 = vmatpush1.bf16.msra.mxu0 %v135
      %158 = vmatprep.subr.bf16.mxu0 0
      %159 = vmatpush1.bf16.msra.mxu0 %v136
      %160 = vmatprep.subr.bf16.mxu0 0
      %161 = vmatpush1.bf16.msra.mxu0 %v137
      %162 = vmatprep.subr.bf16.mxu0 0
      %163 = vmatpush1.bf16.msra.mxu0 0
      %164 = vmatprep.subr.bf16.mxu0 0
      %165 = vmatpush1.bf16.msra.mxu0 0
      %166 = vmatprep.subr.bf16.mxu0 0
      %167 = vmatpush1.bf16.msra.mxu0 0
      %168 = vmatprep.subr.bf16.mxu0 0
      %169 = vmatpush1.bf16.msra.mxu0 0
      %170 = vmatprep.subr.bf16.mxu0 0
      %171 = vmatpush1.bf16.msra.mxu0 0
      %172 = vmatprep.subr.bf16.mxu0 0
      %173 = vmatpush1.bf16.msra.mxu0 0
      %174 = vmatprep.subr.bf16.mxu0 0
      %175 = vmatpush1.bf16.msra.mxu0 0
      %176 = vmatprep.subr.bf16.mxu0 0
      %177 = vmatpush1.bf16.msra.mxu0 0
      %178 = vmatprep.mubr.bf16.mxu0 0
      %179 = vmatmul.mubr.bf16.gmra.mrb[0].mxu0 %v67
      %v180 = vpop.f32.mrb[0].mxu0
      %v181 = vadd.f32 %v96, %v180
      %v182 = vpop.f32.mrb[0].mxu0
      %v183 = vpop.f32.mrb[0].mxu0
      %v184 = vadd.f32 %v96, %v183
      %v185 = vpop.f32.mrb[0].mxu0
      %186 = vmatprep.mubr.bf16.mxu0 0
      %187 = vmatmul.mubr.bf16.gmra.mrb[0].mxu0 %v68
      %v188 = vpop.f32.mrb[0].mxu0
      %v189 = vadd.f32 %v96, %v188
      %v190 = vpop.f32.mrb[0].mxu0
      %v191 = vpop.f32.mrb[0].mxu0
      %v192 = vadd.f32 %v96, %v191
      %v193 = vpop.f32.mrb[0].mxu0
      %194 = vmatprep.mubr.bf16.mxu0 0
      %195 = vmatmul.mubr.bf16.gmra.mrb[0].mxu0 %v69
      %v196 = vpop.f32.mrb[0].mxu0
      %v197 = vadd.f32 %v96, %v196
      %v198 = vpop.f32.mrb[0].mxu0
      %v199 = vpop.f32.mrb[0].mxu0
      %v200 = vadd.f32 %v96, %v199
      %v201 = vpop.f32.mrb[0].mxu0
      %202 = vmatprep.mubr.bf16.mxu0 0
      %203 = vmatmul.mubr.bf16.gmra.mrb[0].mxu0 %v70
      %v204 = vpop.f32.mrb[0].mxu0
      %v205 = vadd.f32 %v96, %v204
      %v206 = vpop.f32.mrb[0].mxu0
      %v207 = vpop.f32.mrb[0].mxu0
      %v208 = vadd.f32 %v96, %v207
      %v209 = vpop.f32.mrb[0].mxu0
      %210 = vmatprep.mubr.bf16.mxu0 0
      %211 = vmatmul.mubr.bf16.gmra.mrb[0].mxu0 %v71
      %v212 = vpop.f32.mrb[0].mxu0
      %v213 = vadd.f32 %v96, %v212
      %v214 = vpop.f32.mrb[0].mxu0
      %v215 = vpop.f32.mrb[0].mxu0
      %v216 = vadd.f32 %v96, %v215
      %v217 = vpop.f32.mrb[0].mxu0
      %218 = vmatprep.mubr.bf16.mxu0 0
      %219 = vmatmul.mubr.bf16.gmra.mrb[0].mxu0 %v72
      %v220 = vpop.f32.mrb[0].mxu0
      %v221 = vadd.f32 %v96, %v220
      %v222 = vpop.f32.mrb[0].mxu0
      %v223 = vpop.f32.mrb[0].mxu0
      %v224 = vadd.f32 %v96, %v223
      %v225 = vpop.f32.mrb[0].mxu0
      %226 = vmatprep.mubr.bf16.mxu0 0
      %227 = vmatmul.mubr.bf16.gmra.mrb[0].mxu0 %v73
      %v228 = vpop.f32.mrb[0].mxu0
      %v229 = vadd.f32 %v96, %v228
      %v230 = vpop.f32.mrb[0].mxu0
      %v231 = vpop.f32.mrb[0].mxu0
      %v232 = vadd.f32 %v96, %v231
      %v233 = vpop.f32.mrb[0].mxu0
      %234 = vmatprep.mubr.bf16.mxu0 0
      %235 = vmatmul.mubr.bf16.gmra.mrb[0].mxu0 %v74
      %v236 = vpop.f32.mrb[0].mxu0
      %v237 = vadd.f32 %v96, %v236
      %v238 = vpop.f32.mrb[0].mxu0
      %v239 = vpop.f32.mrb[0].mxu0
      %v240 = vadd.f32 %v96, %v239
      %v241 = vpop.f32.mrb[0].mxu0
      %242 = vdwg.mxu0
      %v243 = vmax.f32 %v181, 0.0
      %v244 = vmax.f32 %v184, 0.0
      %v245 = vmax.f32 %v189, 0.0
      %v246 = vmax.f32 %v192, 0.0
      %v247 = vmax.f32 %v197, 0.0
      %v248 = vmax.f32 %v200, 0.0
      %v249 = vmax.f32 %v205, 0.0
      %v250 = vmax.f32 %v208, 0.0
      %v251 = vmax.f32 %v213, 0.0
      %v252 = vmax.f32 %v216, 0.0
      %v253 = vmax.f32 %v221, 0.0
      %v254 = vmax.f32 %v224, 0.0
      %v255 = vmax.f32 %v229, 0.0
      %v256 = vmax.f32 %v232, 0.0
      %v257 = vmax.f32 %v237, 0.0
      %v258 = vmax.f32 %v240, 0.0
      %v259 = vpack.c.bf16 %v244, %v243
      %v260 = vpack.c.bf16 %v246, %v245
      %v261 = vpack.c.bf16 %v248, %v247
      %v262 = vpack.c.bf16 %v250, %v249
      %v263 = vpack.c.bf16 %v252, %v251
      %v264 = vpack.c.bf16 %v254, %v253
      %v265 = vpack.c.bf16 %v256, %v255
      %v266 = vpack.c.bf16 %v258, %v257
      %v267 = vld [vmem:[#allocation8] sm:$0xf]
      %v268 = vld [vmem:[#allocation8 + $0x4] sm:$0xf]
      %v269 = vld [vmem:[#allocation8 + $0x8] sm:$0xf]
      %v270 = vld [vmem:[#allocation8 + $0xc] sm:$0xf]
      %v271 = vld [vmem:[#allocation8 + $0x10] sm:$0xf]
      %v272 = vld [vmem:[#allocation8 + $0x14] sm:$0xf]
      %v273 = vld [vmem:[#allocation8 + $0x18] sm:$0xf]
      %v274 = vld [vmem:[#allocation8 + $0x1c] sm:$0xf]
      %v275 = vld [vmem:[#allocation8 + $0x20] sm:$0xf]
      %v276 = vld [vmem:[#allocation8 + $0x24] sm:$0xf]
      %v277 = vld [vmem:[#allocation8 + $0x28] sm:$0xf]
      %v278 = vld [vmem:[#allocation8 + $0x2c] sm:$0xf]
      %v279 = vld [vmem:[#allocation8 + $0x30] sm:$0xf]
      %v280 = vld [vmem:[#allocation8 + $0x34] sm:$0xf]
      %v281 = vld [vmem:[#allocation8 + $0x38] sm:$0xf]
      %v282 = vld [vmem:[#allocation8 + $0x3c] sm:$0xf]
      %v299 = vunpack.c.l.b16 %v267
      %v300 = vunpack.c.l.b16 %v268
      %v301 = vunpack.c.l.b16 %v269
      %v302 = vunpack.c.l.b16 %v270
      %v303 = vunpack.c.l.b16 %v271
      %v304 = vunpack.c.l.b16 %v272
      %v305 = vunpack.c.l.b16 %v273
      %v306 = vunpack.c.l.b16 %v274
      %v307 = vunpack.c.l.b16 %v275
      %v308 = vunpack.c.l.b16 %v276
      %v309 = vunpack.c.l.b16 %v277
      %v310 = vunpack.c.l.b16 %v278
      %v311 = vunpack.c.l.b16 %v279
      %v312 = vunpack.c.l.b16 %v280
      %v313 = vunpack.c.l.b16 %v281
      %v314 = vunpack.c.l.b16 %v282
      %v315 = vpack.c.b16 %v300, %v299
      %v316 = vpack.c.b16 %v302, %v301
      %v317 = vpack.c.b16 %v304, %v303
      %v318 = vpack.c.b16 %v306, %v305
      %v319 = vpack.c.b16 %v308, %v307
      %v320 = vpack.c.b16 %v310, %v309
      %v321 = vpack.c.b16 %v312, %v311
      %v322 = vpack.c.b16 %v314, %v313
      %331 = vmatprep.subr.bf16.mxu0 0
      %332 = vmatpush1.bf16.msra.mxu0 %v315
      %333 = vmatprep.subr.bf16.mxu0 0
      %334 = vmatpush1.bf16.msra.mxu0 %v316
      %335 = vmatprep.subr.bf16.mxu0 0
      %336 = vmatpush1.bf16.msra.mxu0 %v317
      %337 = vmatprep.subr.bf16.mxu0 0
      %338 = vmatpush1.bf16.msra.mxu0 %v318
      %339 = vmatprep.subr.bf16.mxu0 0
      %340 = vmatpush1.bf16.msra.mxu0 %v319
      %341 = vmatprep.subr.bf16.mxu0 0
      %342 = vmatpush1.bf16.msra.mxu0 %v320
      %343 = vmatprep.subr.bf16.mxu0 0
      %344 = vmatpush1.bf16.msra.mxu0 %v321
      %345 = vmatprep.subr.bf16.mxu0 0
      %346 = vmatpush1.bf16.msra.mxu0 %v322
      %347 = vmatprep.subr.bf16.mxu0 0
      %348 = vmatpush1.bf16.msra.mxu0 0
      %349 = vmatprep.subr.bf16.mxu0 0
      %350 = vmatpush1.bf16.msra.mxu0 0
      %351 = vmatprep.subr.bf16.mxu0 0
      %352 = vmatpush1.bf16.msra.mxu0 0
      %353 = vmatprep.subr.bf16.mxu0 0
      %354 = vmatpush1.bf16.msra.mxu0 0
      %355 = vmatprep.subr.bf16.mxu0 0
      %356 = vmatpush1.bf16.msra.mxu0 0
      %357 = vmatprep.subr.bf16.mxu0 0
      %358 = vmatpush1.bf16.msra.mxu0 0
      %359 = vmatprep.subr.bf16.mxu0 0
      %360 = vmatpush1.bf16.msra.mxu0 0
      %361 = vmatprep.subr.bf16.mxu0 0
      %362 = vmatpush1.bf16.msra.mxu0 0
      %363 = vmatprep.mubr.bf16.mxu0 0
      %364 = vmatmul.mubr.bf16.gmra.mrb[0].mxu0 %v259
      %v365 = vpop.f32.mrb[0].mxu0
      %v366 = vadd.f32 0.0, %v365
      %v367 = vpop.f32.mrb[0].mxu0
      %v368 = vpop.f32.mrb[0].mxu0
      %v369 = vadd.f32 0.0, %v368
      %v370 = vpop.f32.mrb[0].mxu0
      %371 = vmatprep.mubr.bf16.mxu0 0
      %372 = vmatmul.mubr.bf16.gmra.mrb[0].mxu0 %v260
      %v373 = vpop.f32.mrb[0].mxu0
      %v374 = vadd.f32 0.0, %v373
      %v375 = vpop.f32.mrb[0].mxu0
      %v376 = vpop.f32.mrb[0].mxu0
      %v377 = vadd.f32 0.0, %v376
      %v378 = vpop.f32.mrb[0].mxu0
      %379 = vmatprep.mubr.bf16.mxu0 0
      %380 = vmatmul.mubr.bf16.gmra.mrb[0].mxu0 %v261
      %v381 = vpop.f32.mrb[0].mxu0
      %v382 = vadd.f32 0.0, %v381
      %v383 = vpop.f32.mrb[0].mxu0
      %v384 = vpop.f32.mrb[0].mxu0
      %v385 = vadd.f32 0.0, %v384
      %v386 = vpop.f32.mrb[0].mxu0
      %387 = vmatprep.mubr.bf16.mxu0 0
      %388 = vmatmul.mubr.bf16.gmra.mrb[0].mxu0 %v262
      %v389 = vpop.f32.mrb[0].mxu0
      %v390 = vadd.f32 0.0, %v389
      %v391 = vpop.f32.mrb[0].mxu0
      %v392 = vpop.f32.mrb[0].mxu0
      %v393 = vadd.f32 0.0, %v392
      %v394 = vpop.f32.mrb[0].mxu0
      %395 = vmatprep.mubr.bf16.mxu0 0
      %396 = vmatmul.mubr.bf16.gmra.mrb[0].mxu0 %v263
      %v397 = vpop.f32.mrb[0].mxu0
      %v398 = vadd.f32 0.0, %v397
      %v399 = vpop.f32.mrb[0].mxu0
      %v400 = vpop.f32.mrb[0].mxu0
      %v401 = vadd.f32 0.0, %v400
      %v402 = vpop.f32.mrb[0].mxu0
      %403 = vmatprep.mubr.bf16.mxu0 0
      %404 = vmatmul.mubr.bf16.gmra.mrb[0].mxu0 %v264
      %v405 = vpop.f32.mrb[0].mxu0
      %v406 = vadd.f32 0.0, %v405
      %v407 = vpop.f32.mrb[0].mxu0
      %v408 = vpop.f32.mrb[0].mxu0
      %v409 = vadd.f32 0.0, %v408
      %v410 = vpop.f32.mrb[0].mxu0
      %411 = vmatprep.mubr.bf16.mxu0 0
      %412 = vmatmul.mubr.bf16.gmra.mrb[0].mxu0 %v265
      %v413 = vpop.f32.mrb[0].mxu0
      %v414 = vadd.f32 0.0, %v413
      %v415 = vpop.f32.mrb[0].mxu0
      %v416 = vpop.f32.mrb[0].mxu0
      %v417 = vadd.f32 0.0, %v416
      %v418 = vpop.f32.mrb[0].mxu0
      %419 = vmatprep.mubr.bf16.mxu0 0
      %420 = vmatmul.mubr.bf16.gmra.mrb[0].mxu0 %v266
      %v421 = vpop.f32.mrb[0].mxu0
      %v422 = vadd.f32 0.0, %v421
      %v423 = vpop.f32.mrb[0].mxu0
      %v424 = vpop.f32.mrb[0].mxu0
      %v425 = vadd.f32 0.0, %v424
      %v426 = vpop.f32.mrb[0].mxu0
      %427 = vdwg.mxu0
      %v428 = vpack.c.bf16 %v369, %v366
      %v429 = vpack.c.bf16 %v377, %v374
      %v430 = vpack.c.bf16 %v385, %v382
      %v431 = vpack.c.bf16 %v393, %v390
      %v432 = vpack.c.bf16 %v401, %v398
      %v433 = vpack.c.bf16 %v409, %v406
      %v434 = vpack.c.bf16 %v417, %v414
      %v435 = vpack.c.bf16 %v425, %v422
      %436 = vst [vmem:[#allocation3] sm:$0xff] %v428
      %437 = vst [vmem:[#allocation3 + $0x8] sm:$0xff] %v429
      %438 = vst [vmem:[#allocation3 + $0x10] sm:$0xff] %v430
      %439 = vst [vmem:[#allocation3 + $0x18] sm:$0xff] %v431
      %440 = vst [vmem:[#allocation3 + $0x20] sm:$0xff] %v432
      %441 = vst [vmem:[#allocation3 + $0x28] sm:$0xff] %v433
      %442 = vst [vmem:[#allocation3 + $0x30] sm:$0xff] %v434
      %443 = vst [vmem:[#allocation3 + $0x38] sm:$0xff] %v435
    $region29: #{tpu_custom_call.1} parent=1 // pred_fallthru
      _
    %s444 = smul.u32 0, 128
    %s445 = sshra.s32 %s444, 4
    %s446 = sand.u32 %s444, 15
    %s447 = smul.addr %s445, 8
    %s448 = scalar_lea.vmem [#allocation2], %s447
    %v449 = vld [vmem:[%s448] sm:$0xff]
    %v450 = vld [vmem:[%s448 + $0x8] sm:$0xff]
    %v451 = vld [vmem:[%s448 + $0x10] sm:$0xff]
    %v452 = vld [vmem:[%s448 + $0x18] sm:$0xff]
    %v453 = vld [vmem:[%s448 + $0x20] sm:$0xff]
    %v454 = vld [vmem:[%s448 + $0x28] sm:$0xff]
    %v455 = vld [vmem:[%s448 + $0x30] sm:$0xff]
    %v456 = vld [vmem:[%s448 + $0x38] sm:$0xff]
    %v457 = vld [vmem:[#allocation3] sm:$0xff]
    %v458 = vld [vmem:[#allocation3 + $0x8] sm:$0xff]
    %v459 = vld [vmem:[#allocation3 + $0x10] sm:$0xff]
    %v460 = vld [vmem:[#allocation3 + $0x18] sm:$0xff]
    %v461 = vld [vmem:[#allocation3 + $0x20] sm:$0xff]
    %v462 = vld [vmem:[#allocation3 + $0x28] sm:$0xff]
    %v463 = vld [vmem:[#allocation3 + $0x30] sm:$0xff]
    %v464 = vld [vmem:[#allocation3 + $0x38] sm:$0xff]
    %v465 = vld [vmem:[%s4] sm:$0x1]
    %v467 = vlaneseq
    %v468 = vshrl.u32 %v467, 7
    %v469 = vsub.s32 0, %v468
    %v470 = vrot.slane %v465, %v469
    %472 = vmatprep.subr.bf16.mxu0 0
    %473 = vmatpush1.bf16.msra.mxu0 %v457
    %474 = vmatprep.subr.bf16.mxu0 0
    %475 = vmatpush1.bf16.msra.mxu0 %v458
    %476 = vmatprep.subr.bf16.mxu0 0
    %477 = vmatpush1.bf16.msra.mxu0 %v459
    %478 = vmatprep.subr.bf16.mxu0 0
    %479 = vmatpush1.bf16.msra.mxu0 %v460
    %480 = vmatprep.subr.bf16.mxu0 0
    %481 = vmatpush1.bf16.msra.mxu0 %v461
    %482 = vmatprep.subr.bf16.mxu0 0
    %483 = vmatpush1.bf16.msra.mxu0 %v462
    %484 = vmatprep.subr.bf16.mxu0 0
    %485 = vmatpush1.bf16.msra.mxu0 %v463
    %486 = vmatprep.subr.bf16.mxu0 0
    %487 = vmatpush1.bf16.msra.mxu0 %v464
    %488 = vmatprep.subr.bf16.mxu0 0
    %489 = vmatpush1.bf16.msra.mxu0 0
    %490 = vmatprep.subr.bf16.mxu0 0
    %491 = vmatpush1.bf16.msra.mxu0 0
    %492 = vmatprep.subr.bf16.mxu0 0
    %493 = vmatpush1.bf16.msra.mxu0 0
    %494 = vmatprep.subr.bf16.mxu0 0
    %495 = vmatpush1.bf16.msra.mxu0 0
    %496 = vmatprep.subr.bf16.mxu0 0
    %497 = vmatpush1.bf16.msra.mxu0 0
    %498 = vmatprep.subr.bf16.mxu0 0
    %499 = vmatpush1.bf16.msra.mxu0 0
    %500 = vmatprep.subr.bf16.mxu0 0
    %501 = vmatpush1.bf16.msra.mxu0 0
    %502 = vmatprep.subr.bf16.mxu0 0
    %503 = vmatpush1.bf16.msra.mxu0 0
    %504 = vmatprep.mubr.bf16.mxu0 0
    %505 = vmatmul.mubr.bf16.gmra.mrb[0].mxu0 %v449
    %v506 = vpop.f32.mrb[0].mxu0
    %v507 = vadd.f32 %v470, %v506
    %v508 = vpop.f32.mrb[0].mxu0
    %v509 = vpop.f32.mrb[0].mxu0
    %v510 = vadd.f32 %v470, %v509
    %v511 = vpop.f32.mrb[0].mxu0
    %512 = vmatprep.mubr.bf16.mxu0 0
    %513 = vmatmul.mubr.bf16.gmra.mrb[0].mxu0 %v450
    %v514 = vpop.f32.mrb[0].mxu0
    %v515 = vadd.f32 %v470, %v514
    %v516 = vpop.f32.mrb[0].mxu0
    %v517 = vpop.f32.mrb[0].mxu0
    %v518 = vadd.f32 %v470, %v517
    %v519 = vpop.f32.mrb[0].mxu0
    %520 = vmatprep.mubr.bf16.mxu0 0
    %521 = vmatmul.mubr.bf16.gmra.mrb[0].mxu0 %v451
    %v522 = vpop.f32.mrb[0].mxu0
    %v523 = vadd.f32 %v470, %v522
    %v524 = vpop.f32.mrb[0].mxu0
    %v525 = vpop.f32.mrb[0].mxu0
    %v526 = vadd.f32 %v470, %v525
    %v527 = vpop.f32.mrb[0].mxu0
    %528 = vmatprep.mubr.bf16.mxu0 0
    %529 = vmatmul.mubr.bf16.gmra.mrb[0].mxu0 %v452
    %v530 = vpop.f32.mrb[0].mxu0
    %v531 = vadd.f32 %v470, %v530
    %v532 = vpop.f32.mrb[0].mxu0
    %v533 = vpop.f32.mrb[0].mxu0
    %v534 = vadd.f32 %v470, %v533
    %v535 = vpop.f32.mrb[0].mxu0
    %536 = vmatprep.mubr.bf16.mxu0 0
    %537 = vmatmul.mubr.bf16.gmra.mrb[0].mxu0 %v453
    %v538 = vpop.f32.mrb[0].mxu0
    %v539 = vadd.f32 %v470, %v538
    %v540 = vpop.f32.mrb[0].mxu0
    %v541 = vpop.f32.mrb[0].mxu0
    %v542 = vadd.f32 %v470, %v541
    %v543 = vpop.f32.mrb[0].mxu0
    %544 = vmatprep.mubr.bf16.mxu0 0
    %545 = vmatmul.mubr.bf16.gmra.mrb[0].mxu0 %v454
    %v546 = vpop.f32.mrb[0].mxu0
    %v547 = vadd.f32 %v470, %v546
    %v548 = vpop.f32.mrb[0].mxu0
    %v549 = vpop.f32.mrb[0].mxu0
    %v550 = vadd.f32 %v470, %v549
    %v551 = vpop.f32.mrb[0].mxu0
    %552 = vmatprep.mubr.bf16.mxu0 0
    %553 = vmatmul.mubr.bf16.gmra.mrb[0].mxu0 %v455
    %v554 = vpop.f32.mrb[0].mxu0
    %v555 = vadd.f32 %v470, %v554
    %v556 = vpop.f32.mrb[0].mxu0
    %v557 = vpop.f32.mrb[0].mxu0
    %v558 = vadd.f32 %v470, %v557
    %v559 = vpop.f32.mrb[0].mxu0
    %560 = vmatprep.mubr.bf16.mxu0 0
    %561 = vmatmul.mubr.bf16.gmra.mrb[0].mxu0 %v456
    %v562 = vpop.f32.mrb[0].mxu0
    %v563 = vadd.f32 %v470, %v562
    %v564 = vpop.f32.mrb[0].mxu0
    %v565 = vpop.f32.mrb[0].mxu0
    %v566 = vadd.f32 %v470, %v565
    %v567 = vpop.f32.mrb[0].mxu0
    %568 = vdwg.mxu0
    %569 = vst [vmem:[#allocation10] sm:$0xff] %v507
    %570 = vst [vmem:[#allocation10 + $0x8] sm:$0xff] %v510
    %571 = vst [vmem:[#allocation10 + $0x10] sm:$0xff] %v515
    %572 = vst [vmem:[#allocation10 + $0x18] sm:$0xff] %v518
    %573 = vst [vmem:[#allocation10 + $0x20] sm:$0xff] %v523
    %574 = vst [vmem:[#allocation10 + $0x28] sm:$0xff] %v526
    %575 = vst [vmem:[#allocation10 + $0x30] sm:$0xff] %v531
    %576 = vst [vmem:[#allocation10 + $0x38] sm:$0xff] %v534
    %577 = vst [vmem:[#allocation10 + $0x40] sm:$0xff] %v539
    %578 = vst [vmem:[#allocation10 + $0x48] sm:$0xff] %v542
    %579 = vst [vmem:[#allocation10 + $0x50] sm:$0xff] %v547
    %580 = vst [vmem:[#allocation10 + $0x58] sm:$0xff] %v550
    %581 = vst [vmem:[#allocation10 + $0x60] sm:$0xff] %v555
    %582 = vst [vmem:[#allocation10 + $0x68] sm:$0xff] %v558
    %583 = vst [vmem:[#allocation10 + $0x70] sm:$0xff] %v563
    %584 = vst [vmem:[#allocation10 + $0x78] sm:$0xff] %v566
    // Predicated region
    $region34: #{tpu_custom_call.1} parent=1 // pred_check
      _
    $region35: #{tpu_custom_call.1} parent=1 // pred_check_branch
      %586 = sbr.rel (0) target = $region37
    $region36: #{tpu_custom_call.1} parent=1 // pred_region
      %s588 = ssub.s32 2048, 2048
      %589 = vsyncadd [#allocation7], %s588
      %s590 = sshll.u32 [#allocation10], 4
      %s591 = int_to_ptr.vmem [resolvable:$true] %s590
      %596 = dma.vmem_to_hbm [thread:$0]  %s591, 2048, %s5, [#allocation7], 128, 128, 8
    $region37: #{tpu_custom_call.1} parent=1 // pred_fallthru
      _
    // Predicated region
    $region38: #{tpu_custom_call.1} parent=1 // pred_check
      _
    $region39: #{tpu_custom_call.1} parent=1 // pred_check_branch
      %598 = sbr.rel (0) target = $region41
    $region40: #{tpu_custom_call.1} parent=1 // pred_region
      %599 = dma.done [#allocation7], 2048
    $region41: #{tpu_custom_call.1} parent=1 // pred_fallthru
      _
    %600 = vsyncpa [#allocation6], 1
    %601 = vsyncpa [#allocation9], 1
    %602 = vsyncpa [#allocation7], 1
  %603 = vsyncmov [#allocation4]
  %s604 = vpop.sfrf %603
  %p605 = scmp.eq.s32.totalorder %s604, 0
  %p606 = pneg %p605
  %608 = shalt.err (%p606)
  %s609 = scalar_lea.sflag [#allocation4], 1
  %610 = vsyncmov %s609
  %s611 = vpop.sfrf %610
  %p612 = scmp.eq.s32.totalorder %s611, 0
  %p613 = pneg %p612
  %615 = shalt.err (%p613)

</llo_original>
